<compile_context>
chip_gen: v7x
topology: tpu7x:2x2x1
jax: 0.10.0
libtpu: 0.0.40
codegen_flags: <defaults>
</compile_context>

<pallas_src>
import functools
import math

import jax
import jax.numpy as jnp
from jax import lax
from jax.experimental import pallas as pl
from jax.experimental.pallas import tpu as pltpu


def arn_kernel(xf_ref, zf_ref, m_ref, ws_ref, wt_ref, out_ref):
    # Per grid step: a block of `bb` batches.
    #   xf_ref : (bb, Cin+1, Nx)   channels (+ ones row) on sublanes, Nx lane-dense
    #   zf_ref : (bb, Cin+1, Nz)
    #   m_ref  : (bb, 1, Nz)       bilinearly upsampled template mask
    #   ws_ref : (Cout, Cin+1)     search embedding; bias folded as last column,
    #                              pre-scaled by 1/sqrt(Cout) (one side only)
    #   wt_ref : (Cout, Cin+1)     template embedding, bias folded
    #   out_ref: (bb, Nx)
    ws = ws_ref[...]
    wt = wt_ref[...]
    bb = out_ref.shape[0]
    # Static unroll over the (tiny) batch block; the per-batch MXU/EUP/XLU chains
    # are independent so the scheduler can interleave them.
    for b in range(bb):
        xeT = jnp.dot(ws, xf_ref[b], preferred_element_type=jnp.float32)   # (Cout, Nx)
        zeT = jnp.dot(wt, zf_ref[b], preferred_element_type=jnp.float32)   # (Cout, Nz)
        # attT[z, x] = ze[z] . xe[x]   (1/sqrt(Cout) already folded into ws)
        attT = lax.dot_general(zeT, xeT, (((0,), (0,)), ((), ())),
                               preferred_element_type=jnp.float32)          # (Nz, Nx)
        attT = attT - jnp.max(attT, axis=0, keepdims=True)                  # XLU
        p = jnp.exp(attT)                                                   # EUP
        num = jnp.dot(m_ref[b], p, preferred_element_type=jnp.float32)      # (1, Nx)
        den = jnp.sum(p, axis=0, keepdims=True)                             # (1, Nx), XLU
        # exact reciprocal (approx=False) keeps 1e-5 agreement with the reference
        out_ref[pl.ds(b, 1), :] = num * pl.reciprocal(den)


def _linear_interp_matrix(out_size, in_size, dtype=jnp.float32):
    """Row-interpolation matrix for 1-D linear interp with align_corners=True."""
    if out_size == 1:
        m = jnp.zeros((1, in_size), dtype)
        return m.at[0, 0].set(1.0)
    scale = (in_size - 1) / (out_size - 1)
    coords = jnp.arange(out_size, dtype=dtype) * scale
    lo = jnp.clip(jnp.floor(coords).astype(jnp.int32), 0, in_size - 1)
    hi = jnp.clip(lo + 1, 0, in_size - 1)
    w_hi = coords - lo.astype(dtype)
    w_lo = 1.0 - w_hi
    rows = jnp.arange(out_size)
    m = jnp.zeros((out_size, in_size), dtype)
    m = m.at[rows, lo].add(w_lo)
    m = m.at[rows, hi].add(w_hi)
    return m


def prepare_arn(params, *, mask_hw, template_hw):
    """One-time parameter prep (hoisted out of the per-call path).

    Folds each conv bias into an extra weight column, folds the 1/sqrt(Cout)
    attention scale into the search side only, and builds the bilinear
    (align_corners=True) interpolation matrices for the mask upsample.
    """
    Cout, Cin = params["ws"].shape[0], params["ws"].shape[1]
    scale = 1.0 / math.sqrt(Cout)
    ws = jnp.concatenate(
        [params["ws"].reshape(Cout, Cin), params["bs"].reshape(Cout, 1)],
        axis=1).astype(jnp.float32) * scale
    wt = jnp.concatenate(
        [params["wt"].reshape(Cout, Cin), params["bt"].reshape(Cout, 1)],
        axis=1).astype(jnp.float32)
    Hz, Wz = template_hw
    Hm, Wm = mask_hw
    return {
        "ws": ws,                                   # (Cout, Cin+1), scaled
        "wt": wt,                                   # (Cout, Cin+1)
        "R": _linear_interp_matrix(Hz, Hm),         # (Hz, Hm)
        "CmT": _linear_interp_matrix(Wz, Wm).T,     # (Wm, Wz)
    }


def _default_batch_block(B):
    """One grid step per TensorCore: single step on v5e/v6e, split the batch across
    the 2 TensorCores on v7x.  Detection is best-effort; fall back to 1 core."""
    n_cores = 1
    try:
        kind = jax.devices()[0].device_kind.lower()
        if "v7" in kind or "7x" in kind:
            n_cores = 2
    except Exception:
        pass
    return max(1, -(-B // min(n_cores, B)))


@functools.partial(jax.jit, static_argnames=("batch_block",))
def arn_forward(xf, zf, zf_mask, prep, batch_block=None):
    B, Cin, Hx, Wx = xf.shape
    _, _, Hz, Wz = zf.shape
    assert Hx == Wx, "original module reshapes arn to (B, Hx, Hx)"
    Cout, Cin1 = prep["ws"].shape
    Nx, Nz = Hx * Wx, Hz * Wz

    bb = _default_batch_block(B) if batch_block is None else batch_block
    assert B % bb == 0, "batch block must divide the batch"

    # Native NCHW -> (B, C, N) reshapes plus a ones row so the folded bias column is
    # applied by the same embedding matmul.  All of this fuses under jit.
    ones_x = jnp.ones((B, 1, Nx), jnp.float32)
    ones_z = jnp.ones((B, 1, Nz), jnp.float32)
    xf_aug = jnp.concatenate(
        [xf.reshape(B, Cin, Nx).astype(jnp.float32), ones_x], axis=1)   # (B, Cin+1, Nx)
    zf_aug = jnp.concatenate(
        [zf.reshape(B, Cin, Nz).astype(jnp.float32), ones_z], axis=1)   # (B, Cin+1, Nz)

    # Bilinear upsample (align_corners=True) of zf_mask as two tiny batched matmuls
    # with the precomputed interpolation matrices.
    mask_up = jnp.matmul(jnp.matmul(prep["R"], zf_mask.astype(jnp.float32)),
                         prep["CmT"])                                    # (B, Hz, Wz)
    mask_row = mask_up.reshape(B, 1, Nz)

    out = pl.pallas_call(
        arn_kernel,
        out_shape=jax.ShapeDtypeStruct((B, Nx), jnp.float32),
        grid_spec=pltpu.PrefetchScalarGridSpec(
            num_scalar_prefetch=0,
            grid=(B // bb,),
            in_specs=[
                pl.BlockSpec((bb, Cin1, Nx), lambda i: (i, 0, 0)),
                pl.BlockSpec((bb, Cin1, Nz), lambda i: (i, 0, 0)),
                pl.BlockSpec((bb, 1, Nz), lambda i: (i, 0, 0)),
                pl.BlockSpec((Cout, Cin1), lambda i: (0, 0)),   # weights stay resident
                pl.BlockSpec((Cout, Cin1), lambda i: (0, 0)),
            ],
            out_specs=pl.BlockSpec((bb, Nx), lambda i: (i, 0)),
        ),
        compiler_params=pltpu.CompilerParams(
            dimension_semantics=("parallel",)),
    )(xf_aug, zf_aug, mask_row, prep["ws"], prep["wt"])

    return out.reshape(B, 1, Hx, Hx)


def arn_reference(xf, zf, zf_mask, params):
    """Pure-JAX reference mirroring the PyTorch forward."""
    B, Cin, Hx, Wx = xf.shape
    _, _, Hz, Wz = zf.shape
    Cout = params["ws"].shape[0]
    ws = params["ws"].reshape(Cout, Cin)
    wt = params["wt"].reshape(Cout, Cin)
    xe = jnp.einsum("bchw,oc->bohw", xf, ws) + params["bs"].reshape(1, Cout, 1, 1)
    ze = jnp.einsum("bchw,oc->bohw", zf, wt) + params["bt"].reshape(1, Cout, 1, 1)
    xe = jnp.transpose(xe, (0, 2, 3, 1)).reshape(B, -1, Cout)
    ze = ze.reshape(B, Cout, -1)
    att = jnp.matmul(xe, ze) / math.sqrt(Cout)
    att = jax.nn.softmax(att, axis=-1)
    R = _linear_interp_matrix(Hz, zf_mask.shape[1])
    Cm = _linear_interp_matrix(Wz, zf_mask.shape[2])
    m = jnp.einsum("hm,bmw,nw->bhn", R, zf_mask.astype(jnp.float32), Cm)
    m = m.reshape(B, -1, 1)
    arn = jnp.matmul(att, m)
    return arn.reshape(B, Hx, Hx)[:, None]


def init_params(key, inchannels, outchannels):
    k1, k2, k3, k4 = jax.random.split(key, 4)
    bound = 1.0 / math.sqrt(inchannels)  # PyTorch Conv2d default uniform bound
    return {
        "ws": jax.random.uniform(k1, (outchannels, inchannels, 1, 1),
                                 jnp.float32, -bound, bound),
        "bs": jax.random.uniform(k2, (outchannels,), jnp.float32, -bound, bound),
        "wt": jax.random.uniform(k3, (outchannels, inchannels, 1, 1),
                                 jnp.float32, -bound, bound),
        "bt": jax.random.uniform(k4, (outchannels,), jnp.float32, -bound, bound),
    }


if __name__ == "__main__":
    key = jax.random.PRNGKey(0)
    kx, kz, km, kp = jax.random.split(key, 4)

    B, Cin, Cout = 2, 4, 8
    Hx = Wx = 16          # search region feature
    Hz = Wz = 8           # template feature
    Hm = Wm = 16          # raw template mask resolution

    xf = jax.random.normal(kx, (B, Cin, Hx, Wx), jnp.float32)
    zf = jax.random.normal(kz, (B, Cin, Hz, Wz), jnp.float32)
    zf_mask = jax.random.uniform(km, (B, Hm, Wm), jnp.float32)

    params = init_params(kp, Cin, Cout)
    prep = jax.block_until_ready(
        prepare_arn(params, mask_hw=(Hm, Wm), template_hw=(Hz, Wz)))

    ref = jax.block_until_ready(arn_reference(xf, zf, zf_mask, params))

    # Default (hardware-aware) batch blocking, plus both explicit blockings
    # (single-step collapse and per-batch grid) for robustness on any generation.
    for bb in (None, 1, B):
        out = jax.block_until_ready(
            arn_forward(xf, zf, zf_mask, prep, batch_block=bb))
        assert out.shape == (B, 1, Hx, Hx)
        assert jnp.allclose(out, ref, atol=1e-5, rtol=1e-5)

    print("KERNEL_OK")
</pallas_src>

<mosaic_0001>
module attributes {stable_mosaic.version = 11 : i64} {
  func.func @arn_kernel(%arg0: i32, %arg1: memref<2x5x256xf32, #tpu.memory_space<vmem>>, %arg2: memref<2x5x64xf32, #tpu.memory_space<vmem>>, %arg3: memref<2x1x64xf32, #tpu.memory_space<vmem>>, %arg4: memref<8x5xf32, #tpu.memory_space<vmem>>, %arg5: memref<8x5xf32, #tpu.memory_space<vmem>>, %arg6: memref<2x256xf32, #tpu.memory_space<vmem>>) attributes {dimension_semantics = [#tpu.dimension_semantics<parallel>], iteration_bounds = array<i64: 1>, scalar_prefetch = 0 : i64, scratch_operands = 0 : i64, tpu.core_type = #tpu.core_type<tc>, window_params = [{transform_indices = @transform_0, window_bounds = array<i64: 2, 5, 256>}, {transform_indices = @transform_1, window_bounds = array<i64: 2, 5, 64>}, {transform_indices = @transform_2, window_bounds = array<i64: 2, 1, 64>}, {pipeline_mode = #tpu.pipeline_mode<synchronous>, transform_indices = @transform_3, window_bounds = array<i64: 8, 5>}, {pipeline_mode = #tpu.pipeline_mode<synchronous>, transform_indices = @transform_4, window_bounds = array<i64: 8, 5>}, {transform_indices = @transform_5, window_bounds = array<i64: 2, 256>}]} {
    %c0 = arith.constant 0 : index
    %c0_0 = arith.constant 0 : index
    %0 = vector.load %arg4[%c0, %c0_0] : memref<8x5xf32, #tpu.memory_space<vmem>>, vector<8x5xf32>
    %c0_1 = arith.constant 0 : index
    %c0_2 = arith.constant 0 : index
    %1 = vector.load %arg5[%c0_1, %c0_2] : memref<8x5xf32, #tpu.memory_space<vmem>>, vector<8x5xf32>
    %c0_3 = arith.constant 0 : index
    %c0_4 = arith.constant 0 : index
    %c0_5 = arith.constant 0 : index
    %2 = vector.load %arg1[%c0_3, %c0_4, %c0_5] : memref<2x5x256xf32, #tpu.memory_space<vmem>>, vector<1x5x256xf32>
    %3 = vector.shape_cast %2 : vector<1x5x256xf32> to vector<5x256xf32>
    %cst = arith.constant dense<0.000000e+00> : vector<8x256xf32>
    %4 = tpu.matmul %0, %3, %cst {dimension_numbers = #tpu.dot_dimension_numbers<[1], [0], [0], [1], [0, 0, 1, 1], [], []>} : vector<8x5xf32>, vector<5x256xf32>, vector<8x256xf32> -> vector<8x256xf32>
    %c0_6 = arith.constant 0 : index
    %c0_7 = arith.constant 0 : index
    %c0_8 = arith.constant 0 : index
    %5 = vector.load %arg2[%c0_6, %c0_7, %c0_8] : memref<2x5x64xf32, #tpu.memory_space<vmem>>, vector<1x5x64xf32>
    %6 = vector.shape_cast %5 : vector<1x5x64xf32> to vector<5x64xf32>
    %cst_9 = arith.constant dense<0.000000e+00> : vector<8x64xf32>
    %7 = tpu.matmul %1, %6, %cst_9 {dimension_numbers = #tpu.dot_dimension_numbers<[1], [0], [0], [1], [0, 0, 1, 1], [], []>} : vector<8x5xf32>, vector<5x64xf32>, vector<8x64xf32> -> vector<8x64xf32>
    %cst_10 = arith.constant dense<0.000000e+00> : vector<64x256xf32>
    %8 = tpu.matmul %7, %4, %cst_10 {dimension_numbers = #tpu.dot_dimension_numbers<[0], [0], [1], [1], [0, 1, 1, 1], [], []>} : vector<8x64xf32>, vector<8x256xf32>, vector<64x256xf32> -> vector<64x256xf32>
    %cst_11 = arith.constant dense<0xFF800000> : vector<256xf32>
    %9 = vector.multi_reduction <maximumf>, %8, %cst_11 [0] : vector<64x256xf32> to vector<256xf32>
    %10 = vector.shape_cast %9 : vector<256xf32> to vector<1x256xf32>
    %11 = vector.broadcast %10 : vector<1x256xf32> to vector<64x256xf32>
    %12 = arith.subf %8, %11 : vector<64x256xf32>
    %13 = math.exp %12 : vector<64x256xf32>
    %c0_12 = arith.constant 0 : index
    %c0_13 = arith.constant 0 : index
    %c0_14 = arith.constant 0 : index
    %14 = vector.load %arg3[%c0_12, %c0_13, %c0_14] : memref<2x1x64xf32, #tpu.memory_space<vmem>>, vector<1x1x64xf32>
    %15 = vector.shape_cast %14 : vector<1x1x64xf32> to vector<1x64xf32>
    %cst_15 = arith.constant dense<0.000000e+00> : vector<1x256xf32>
    %16 = tpu.matmul %15, %13, %cst_15 {dimension_numbers = #tpu.dot_dimension_numbers<[1], [0], [0], [1], [0, 0, 1, 1], [], []>} : vector<1x64xf32>, vector<64x256xf32>, vector<1x256xf32> -> vector<1x256xf32>
    %cst_16 = arith.constant dense<0.000000e+00> : vector<256xf32>
    %17 = vector.multi_reduction <add>, %13, %cst_16 [0] : vector<64x256xf32> to vector<256xf32>
    %18 = vector.shape_cast %17 : vector<256xf32> to vector<1x256xf32>
    %19 = tpu.reciprocal %18 : vector<1x256xf32> -> vector<1x256xf32>
    %20 = arith.mulf %16, %19 : vector<1x256xf32>
    %c0_17 = arith.constant 0 : index
    %c0_18 = arith.constant 0 : index
    %21 = vector.load %arg6[%c0_17, %c0_18] : memref<2x256xf32, #tpu.memory_space<vmem>>, vector<1x256xf32>
    tpu.vector_store %arg6[%c0_17, %c0_18], %20 {strides = array<i32>} : memref<2x256xf32, #tpu.memory_space<vmem>>, vector<1x256xf32>,
    %c1 = arith.constant 1 : index
    %c0_19 = arith.constant 0 : index
    %c0_20 = arith.constant 0 : index
    %22 = vector.load %arg1[%c1, %c0_19, %c0_20] : memref<2x5x256xf32, #tpu.memory_space<vmem>>, vector<1x5x256xf32>
    %23 = vector.shape_cast %22 : vector<1x5x256xf32> to vector<5x256xf32>
    %cst_21 = arith.constant dense<0.000000e+00> : vector<8x256xf32>
    %24 = tpu.matmul %0, %23, %cst_21 {dimension_numbers = #tpu.dot_dimension_numbers<[1], [0], [0], [1], [0, 0, 1, 1], [], []>} : vector<8x5xf32>, vector<5x256xf32>, vector<8x256xf32> -> vector<8x256xf32>
    %c1_22 = arith.constant 1 : index
    %c0_23 = arith.constant 0 : index
    %c0_24 = arith.constant 0 : index
    %25 = vector.load %arg2[%c1_22, %c0_23, %c0_24] : memref<2x5x64xf32, #tpu.memory_space<vmem>>, vector<1x5x64xf32>
    %26 = vector.shape_cast %25 : vector<1x5x64xf32> to vector<5x64xf32>
    %cst_25 = arith.constant dense<0.000000e+00> : vector<8x64xf32>
    %27 = tpu.matmul %1, %26, %cst_25 {dimension_numbers = #tpu.dot_dimension_numbers<[1], [0], [0], [1], [0, 0, 1, 1], [], []>} : vector<8x5xf32>, vector<5x64xf32>, vector<8x64xf32> -> vector<8x64xf32>
    %cst_26 = arith.constant dense<0.000000e+00> : vector<64x256xf32>
    %28 = tpu.matmul %27, %24, %cst_26 {dimension_numbers = #tpu.dot_dimension_numbers<[0], [0], [1], [1], [0, 1, 1, 1], [], []>} : vector<8x64xf32>, vector<8x256xf32>, vector<64x256xf32> -> vector<64x256xf32>
    %cst_27 = arith.constant dense<0xFF800000> : vector<256xf32>
    %29 = vector.multi_reduction <maximumf>, %28, %cst_27 [0] : vector<64x256xf32> to vector<256xf32>
    %30 = vector.shape_cast %29 : vector<256xf32> to vector<1x256xf32>
    %31 = vector.broadcast %30 : vector<1x256xf32> to vector<64x256xf32>
    %32 = arith.subf %28, %31 : vector<64x256xf32>
    %33 = math.exp %32 : vector<64x256xf32>
    %c1_28 = arith.constant 1 : index
    %c0_29 = arith.constant 0 : index
    %c0_30 = arith.constant 0 : index
    %34 = vector.load %arg3[%c1_28, %c0_29, %c0_30] : memref<2x1x64xf32, #tpu.memory_space<vmem>>, vector<1x1x64xf32>
    %35 = vector.shape_cast %34 : vector<1x1x64xf32> to vector<1x64xf32>
    %cst_31 = arith.constant dense<0.000000e+00> : vector<1x256xf32>
    %36 = tpu.matmul %35, %33, %cst_31 {dimension_numbers = #tpu.dot_dimension_numbers<[1], [0], [0], [1], [0, 0, 1, 1], [], []>} : vector<1x64xf32>, vector<64x256xf32>, vector<1x256xf32> -> vector<1x256xf32>
    %cst_32 = arith.constant dense<0.000000e+00> : vector<256xf32>
    %37 = vector.multi_reduction <add>, %33, %cst_32 [0] : vector<64x256xf32> to vector<256xf32>
    %38 = vector.shape_cast %37 : vector<256xf32> to vector<1x256xf32>
    %39 = tpu.reciprocal %38 : vector<1x256xf32> -> vector<1x256xf32>
    %40 = arith.mulf %36, %39 : vector<1x256xf32>
    %c1_33 = arith.constant 1 : index
    %c0_34 = arith.constant 0 : index
    %41 = vector.load %arg6[%c1_33, %c0_34] : memref<2x256xf32, #tpu.memory_space<vmem>>, vector<1x256xf32>
    tpu.vector_store %arg6[%c1_33, %c0_34], %40 {strides = array<i32>} : memref<2x256xf32, #tpu.memory_space<vmem>>, vector<1x256xf32>,
    return
  }
  func.func @transform_0(%arg0: i32) -> (i32, i32, i32) {
    %c0_i32 = arith.constant 0 : i32
    %c0_i32_0 = arith.constant 0 : i32
    %c0_i32_1 = arith.constant 0 : i32
    return %arg0, %c0_i32, %c0_i32_0 : i32, i32, i32
  }
  func.func @transform_1(%arg0: i32) -> (i32, i32, i32) {
    %c0_i32 = arith.constant 0 : i32
    %c0_i32_0 = arith.constant 0 : i32
    %c0_i32_1 = arith.constant 0 : i32
    return %arg0, %c0_i32, %c0_i32_0 : i32, i32, i32
  }
  func.func @transform_2(%arg0: i32) -> (i32, i32, i32) {
    %c0_i32 = arith.constant 0 : i32
    %c0_i32_0 = arith.constant 0 : i32
    %c0_i32_1 = arith.constant 0 : i32
    return %arg0, %c0_i32, %c0_i32_0 : i32, i32, i32
  }
  func.func @transform_3(%arg0: i32) -> (i32, i32) {
    %c0_i32 = arith.constant 0 : i32
    %c0_i32_0 = arith.constant 0 : i32
    %c0_i32_1 = arith.constant 0 : i32
    return %c0_i32, %c0_i32_0 : i32, i32
  }
  func.func @transform_4(%arg0: i32) -> (i32, i32) {
    %c0_i32 = arith.constant 0 : i32
    %c0_i32_0 = arith.constant 0 : i32
    %c0_i32_1 = arith.constant 0 : i32
    return %c0_i32, %c0_i32_0 : i32, i32
  }
  func.func @transform_5(%arg0: i32) -> (i32, i32) {
    %c0_i32 = arith.constant 0 : i32
    %c0_i32_0 = arith.constant 0 : i32
    return %arg0, %c0_i32 : i32, i32
  }
}

</mosaic_0001>

<llo_original>
// kernel: arn_forward.1
$region0: #{arn_forward.1}
  #allocation0 [shape = 'u32[]', space=smem, size = 0x4, offset = 0x4, fixed_abs, tag = 'smem constant byte address 0x4 - core index']
  #allocation1 [shape = 'u32[144,128]{1,0:T(1,128)}', space=vmem, size = 0x12000, scoped, tag = 'internal scratch']
  %s0 = inlined_call_operand.vmem [shape: f32[2,5,256], index: 0, kind: input, shape index: {}]
  %s1 = inlined_call_operand.vmem [shape: f32[2,5,64], index: 1, kind: input, shape index: {}]
  %s2 = inlined_call_operand.vmem [shape: f32[2,1,64], index: 2, kind: input, shape index: {}]
  %s3 = inlined_call_operand.vmem [shape: f32[8,5], index: 3, kind: input, shape index: {}]
  %s4 = inlined_call_operand.vmem [shape: f32[8,5], index: 4, kind: input, shape index: {}]
  %s5 = inlined_call_operand.vmem [shape: f32[2,256], index: 5, kind: output, shape index: {}]
  %s6 = sld [smem:[#allocation0]]
  $region30: #{arn_forward.1} parent=0
    _
  %s8 = ssub.s32 1, %s6
  %s9 = scalar_select 0, %s8, %s6
  // Predicated region
  $region2: #{arn_forward.1} parent=0 // pred_check
    _
  $region3: #{arn_forward.1} parent=0 // pred_check_branch
    %11 = sbr.rel (0) target = $region5
  $region4: #{arn_forward.1} parent=0 // pred_region
    _
  $region5: #{arn_forward.1} parent=0 // pred_fallthru
    _
  // Predicated region
  $region6: #{arn_forward.1} parent=0 // pred_check
    _
  $region7: #{arn_forward.1} parent=0 // pred_check_branch
    %13 = sbr.rel (0) target = $region9
  $region8: #{arn_forward.1} parent=0 // pred_region
    _
  $region9: #{arn_forward.1} parent=0 // pred_fallthru
    _
  // Predicated region
  $region10: #{arn_forward.1} parent=0 // pred_check
    _
  $region11: #{arn_forward.1} parent=0 // pred_check_branch
    %15 = sbr.rel (0) target = $region13
  $region12: #{arn_forward.1} parent=0 // pred_region
    _
  $region13: #{arn_forward.1} parent=0 // pred_fallthru
    _
  // Predicated region
  $region14: #{arn_forward.1} parent=0 // pred_check
    _
  $region15: #{arn_forward.1} parent=0 // pred_check_branch
    %17 = sbr.rel (0) target = $region17
  $region16: #{arn_forward.1} parent=0 // pred_region
    _
  $region17: #{arn_forward.1} parent=0 // pred_fallthru
    _
  // Predicated region
  $region18: #{arn_forward.1} parent=0 // pred_check
    _
  $region19: #{arn_forward.1} parent=0 // pred_check_branch
    %19 = sbr.rel (0) target = $region21
  $region20: #{arn_forward.1} parent=0 // pred_region
    _
  $region21: #{arn_forward.1} parent=0 // pred_fallthru
    _
  %v20 = vld [vmem:[%s3] sm:$0xff]
  %v21 = vld [vmem:[%s4] sm:$0xff]
  %v22 = vld [vmem:[%s0] sm:$0x1f]
  %v23 = vld [vmem:[%s0 + $0x8] sm:$0x1f]
  %vm24 = vcmask 39936
  %v26 = vsel %vm24, %v20, 0
  %vm28 = vcmask 1044480
  %v30 = vsel %vm28, %v22, 0
  %v33 = vsel %vm28, %v23, 0
  %35 = vmatprep.subr.mxu0 %v33
  %36 = vmatpush1.msra.mxu0 %v30
  %37 = vmatprep.subr.mxu0 0.0
  %38 = vmatpush1.msra.mxu0 0.0
  %39 = vmatprep.subr.mxu0 0.0
  %40 = vmatpush1.msra.mxu0 0.0
  %41 = vmatprep.subr.mxu0 0.0
  %42 = vmatpush1.msra.mxu0 0.0
  %43 = vmatprep.subr.mxu0 0.0
  %44 = vmatpush1.msra.mxu0 0.0
  %45 = vmatprep.subr.mxu0 0.0
  %46 = vmatpush1.msra.mxu0 0.0
  %47 = vmatprep.subr.mxu0 0.0
  %48 = vmatpush1.msra.mxu0 0.0
  %49 = vmatprep.subr.mxu0 0.0
  %50 = vmatpush1.msra.mxu0 0.0
  %51 = vmatprep.subr.mxu0 0.0
  %52 = vmatpush1.msra.mxu0 0.0
  %53 = vmatprep.subr.mxu0 0.0
  %54 = vmatpush1.msra.mxu0 0.0
  %55 = vmatprep.subr.mxu0 0.0
  %56 = vmatpush1.msra.mxu0 0.0
  %57 = vmatprep.subr.mxu0 0.0
  %58 = vmatpush1.msra.mxu0 0.0
  %59 = vmatprep.subr.mxu0 0.0
  %60 = vmatpush1.msra.mxu0 0.0
  %61 = vmatprep.subr.mxu0 0.0
  %62 = vmatpush1.msra.mxu0 0.0
  %63 = vmatprep.subr.mxu0 0.0
  %64 = vmatpush1.msra.mxu0 0.0
  %65 = vmatprep.subr.mxu0 0.0
  %66 = vmatpush1.msra.mxu0 0.0
  %67 = vmatprep.subr.mxu0 0.0
  %68 = vmatpush1.msra.mxu0 0.0
  %69 = vmatprep.subr.mxu0 0.0
  %70 = vmatpush1.msra.mxu0 0.0
  %71 = vmatprep.subr.mxu0 0.0
  %72 = vmatpush1.msra.mxu0 0.0
  %73 = vmatprep.subr.mxu0 0.0
  %74 = vmatpush1.msra.mxu0 0.0
  %75 = vmatprep.subr.mxu0 0.0
  %76 = vmatpush1.msra.mxu0 0.0
  %77 = vmatprep.subr.mxu0 0.0
  %78 = vmatpush1.msra.mxu0 0.0
  %79 = vmatprep.subr.mxu0 0.0
  %80 = vmatpush1.msra.mxu0 0.0
  %81 = vmatprep.subr.mxu0 0.0
  %82 = vmatpush1.msra.mxu0 0.0
  %83 = vmatprep.subr.mxu0 0.0
  %84 = vmatpush1.msra.mxu0 0.0
  %85 = vmatprep.subr.mxu0 0.0
  %86 = vmatpush1.msra.mxu0 0.0
  %87 = vmatprep.subr.mxu0 0.0
  %88 = vmatpush1.msra.mxu0 0.0
  %89 = vmatprep.subr.mxu0 0.0
  %90 = vmatpush1.msra.mxu0 0.0
  %91 = vmatprep.subr.mxu0 0.0
  %92 = vmatpush1.msra.mxu0 0.0
  %93 = vmatprep.subr.mxu0 0.0
  %94 = vmatpush1.msra.mxu0 0.0
  %95 = vmatprep.subr.mxu0 0.0
  %96 = vmatpush1.msra.mxu0 0.0
  %97 = vmatprep.subr.mxu0 0.0
  %98 = vmatpush1.msra.mxu0 0.0
  %99 = vmatprep.mubr.f32.mxu0 0.0
  %100 = vmatmul.mubr.f32.gmra.mrb[0].mxu0 %v26
  %v101 = vpop.f32.mrb[0].mxu0
  %v102 = vadd.f32 0.0, %v101
  %v103 = vpop.f32.mrb[0].mxu0
  %v104 = vadd.f32 0.0, %v103
  %105 = vdwg.mxu0
  %v106 = vld [vmem:[%s1] sm:$0x1f]
  %v108 = vsel %vm24, %v21, 0
  %v111 = vsel %vm28, %v106, 0
  %113 = vmatprep.subr.mxu0 0.0
  %114 = vmatpush1.msra.mxu0 %v111
  %115 = vmatprep.subr.mxu0 0.0
  %116 = vmatpush1.msra.mxu0 0.0
  %117 = vmatprep.subr.mxu0 0.0
  %118 = vmatpush1.msra.mxu0 0.0
  %119 = vmatprep.subr.mxu0 0.0
  %120 = vmatpush1.msra.mxu0 0.0
  %121 = vmatprep.subr.mxu0 0.0
  %122 = vmatpush1.msra.mxu0 0.0
  %123 = vmatprep.subr.mxu0 0.0
  %124 = vmatpush1.msra.mxu0 0.0
  %125 = vmatprep.subr.mxu0 0.0
  %126 = vmatpush1.msra.mxu0 0.0
  %127 = vmatprep.subr.mxu0 0.0
  %128 = vmatpush1.msra.mxu0 0.0
  %129 = vmatprep.subr.mxu0 0.0
  %130 = vmatpush1.msra.mxu0 0.0
  %131 = vmatprep.subr.mxu0 0.0
  %132 = vmatpush1.msra.mxu0 0.0
  %133 = vmatprep.subr.mxu0 0.0
  %134 = vmatpush1.msra.mxu0 0.0
  %135 = vmatprep.subr.mxu0 0.0
  %136 = vmatpush1.msra.mxu0 0.0
  %137 = vmatprep.subr.mxu0 0.0
  %138 = vmatpush1.msra.mxu0 0.0
  %139 = vmatprep.subr.mxu0 0.0
  %140 = vmatpush1.msra.mxu0 0.0
  %141 = vmatprep.subr.mxu0 0.0
  %142 = vmatpush1.msra.mxu0 0.0
  %143 = vmatprep.subr.mxu0 0.0
  %144 = vmatpush1.msra.mxu0 0.0
  %145 = vmatprep.subr.mxu0 0.0
  %146 = vmatpush1.msra.mxu0 0.0
  %147 = vmatprep.subr.mxu0 0.0
  %148 = vmatpush1.msra.mxu0 0.0
  %149 = vmatprep.subr.mxu0 0.0
  %150 = vmatpush1.msra.mxu0 0.0
  %151 = vmatprep.subr.mxu0 0.0
  %152 = vmatpush1.msra.mxu0 0.0
  %153 = vmatprep.subr.mxu0 0.0
  %154 = vmatpush1.msra.mxu0 0.0
  %155 = vmatprep.subr.mxu0 0.0
  %156 = vmatpush1.msra.mxu0 0.0
  %157 = vmatprep.subr.mxu0 0.0
  %158 = vmatpush1.msra.mxu0 0.0
  %159 = vmatprep.subr.mxu0 0.0
  %160 = vmatpush1.msra.mxu0 0.0
  %161 = vmatprep.subr.mxu0 0.0
  %162 = vmatpush1.msra.mxu0 0.0
  %163 = vmatprep.subr.mxu0 0.0
  %164 = vmatpush1.msra.mxu0 0.0
  %165 = vmatprep.subr.mxu0 0.0
  %166 = vmatpush1.msra.mxu0 0.0
  %167 = vmatprep.subr.mxu0 0.0
  %168 = vmatpush1.msra.mxu0 0.0
  %169 = vmatprep.subr.mxu0 0.0
  %170 = vmatpush1.msra.mxu0 0.0
  %171 = vmatprep.subr.mxu0 0.0
  %172 = vmatpush1.msra.mxu0 0.0
  %173 = vmatprep.subr.mxu0 0.0
  %174 = vmatpush1.msra.mxu0 0.0
  %175 = vmatprep.subr.mxu0 0.0
  %176 = vmatpush1.msra.mxu0 0.0
  %177 = vmatprep.mubr.f32.mxu0 0.0
  %178 = vmatmul.mubr.f32.gmra.mrb[0].mxu0 %v108
  %v179 = vpop.f32.mrb[0].mxu0
  %v180 = vadd.f32 0.0, %v179
  %v181 = vpop.f32.mrb[0].mxu0
  %182 = vdwg.mxu0
  %183 = vxpose.xlu0.b32.start [1/16] %v180, 128
  %184 = vxpose.xlu0.b32.cont [2/16] 0.0, 128
  %185 = vxpose.xlu0.b32.cont [3/16] 0.0, 128
  %186 = vxpose.xlu0.b32.cont [4/16] 0.0, 128
  %187 = vxpose.xlu0.b32.cont [5/16] 0.0, 128
  %188 = vxpose.xlu0.b32.cont [6/16] 0.0, 128
  %189 = vxpose.xlu0.b32.cont [7/16] 0.0, 128
  %190 = vxpose.xlu0.b32.cont [8/16] 0.0, 128
  %191 = vxpose.xlu0.b32.cont [9/16] 0.0, 128
  %192 = vxpose.xlu0.b32.cont [10/16] 0.0, 128
  %193 = vxpose.xlu0.b32.cont [11/16] 0.0, 128
  %194 = vxpose.xlu0.b32.cont [12/16] 0.0, 128
  %195 = vxpose.xlu0.b32.cont [13/16] 0.0, 128
  %196 = vxpose.xlu0.b32.cont [14/16] 0.0, 128
  %197 = vxpose.xlu0.b32.cont [15/16] 0.0, 128
  %198 = vxpose.xlu0.b32.end [16/16] 0.0, 128
  %v199 = vpop.trf.xlu0
  %v200 = vpop.trf.xlu0
  %v201 = vpop.trf.xlu0
  %v202 = vpop.trf.xlu0
  %v203 = vpop.trf.xlu0
  %v204 = vpop.trf.xlu0
  %v205 = vpop.trf.xlu0
  %v206 = vpop.trf.xlu0
  %v207 = vpop.trf.xlu0
  %v208 = vpop.trf.xlu0
  %v209 = vpop.trf.xlu0
  %v210 = vpop.trf.xlu0
  %v211 = vpop.trf.xlu0
  %v212 = vpop.trf.xlu0
  %v213 = vpop.trf.xlu0
  %v214 = vpop.trf.xlu0
  %vm215 = vcmask 64512
  %v217 = vsel %vm215, %v199, 0
  %v220 = vsel %vm215, %v200, 0
  %v223 = vsel %vm215, %v201, 0
  %v226 = vsel %vm215, %v202, 0
  %v229 = vsel %vm215, %v203, 0
  %v232 = vsel %vm215, %v204, 0
  %v235 = vsel %vm215, %v205, 0
  %v238 = vsel %vm215, %v206, 0
  %240 = vmatprep.subr.mxu0 %v104
  %241 = vmatpush1.msra.mxu0 %v102
  %242 = vmatprep.subr.mxu0 0.0
  %243 = vmatpush1.msra.mxu0 0.0
  %244 = vmatprep.subr.mxu0 0.0
  %245 = vmatpush1.msra.mxu0 0.0
  %246 = vmatprep.subr.mxu0 0.0
  %247 = vmatpush1.msra.mxu0 0.0
  %248 = vmatprep.subr.mxu0 0.0
  %249 = vmatpush1.msra.mxu0 0.0
  %250 = vmatprep.subr.mxu0 0.0
  %251 = vmatpush1.msra.mxu0 0.0
  %252 = vmatprep.subr.mxu0 0.0
  %253 = vmatpush1.msra.mxu0 0.0
  %254 = vmatprep.subr.mxu0 0.0
  %255 = vmatpush1.msra.mxu0 0.0
  %256 = vmatprep.subr.mxu0 0.0
  %257 = vmatpush1.msra.mxu0 0.0
  %258 = vmatprep.subr.mxu0 0.0
  %259 = vmatpush1.msra.mxu0 0.0
  %260 = vmatprep.subr.mxu0 0.0
  %261 = vmatpush1.msra.mxu0 0.0
  %262 = vmatprep.subr.mxu0 0.0
  %263 = vmatpush1.msra.mxu0 0.0
  %264 = vmatprep.subr.mxu0 0.0
  %265 = vmatpush1.msra.mxu0 0.0
  %266 = vmatprep.subr.mxu0 0.0
  %267 = vmatpush1.msra.mxu0 0.0
  %268 = vmatprep.subr.mxu0 0.0
  %269 = vmatpush1.msra.mxu0 0.0
  %270 = vmatprep.subr.mxu0 0.0
  %271 = vmatpush1.msra.mxu0 0.0
  %272 = vmatprep.subr.mxu0 0.0
  %273 = vmatpush1.msra.mxu0 0.0
  %274 = vmatprep.subr.mxu0 0.0
  %275 = vmatpush1.msra.mxu0 0.0
  %276 = vmatprep.subr.mxu0 0.0
  %277 = vmatpush1.msra.mxu0 0.0
  %278 = vmatprep.subr.mxu0 0.0
  %279 = vmatpush1.msra.mxu0 0.0
  %280 = vmatprep.subr.mxu0 0.0
  %281 = vmatpush1.msra.mxu0 0.0
  %282 = vmatprep.subr.mxu0 0.0
  %283 = vmatpush1.msra.mxu0 0.0
  %284 = vmatprep.subr.mxu0 0.0
  %285 = vmatpush1.msra.mxu0 0.0
  %286 = vmatprep.subr.mxu0 0.0
  %287 = vmatpush1.msra.mxu0 0.0
  %288 = vmatprep.subr.mxu0 0.0
  %289 = vmatpush1.msra.mxu0 0.0
  %290 = vmatprep.subr.mxu0 0.0
  %291 = vmatpush1.msra.mxu0 0.0
  %292 = vmatprep.subr.mxu0 0.0
  %293 = vmatpush1.msra.mxu0 0.0
  %294 = vmatprep.subr.mxu0 0.0
  %295 = vmatpush1.msra.mxu0 0.0
  %296 = vmatprep.subr.mxu0 0.0
  %297 = vmatpush1.msra.mxu0 0.0
  %298 = vmatprep.subr.mxu0 0.0
  %299 = vmatpush1.msra.mxu0 0.0
  %300 = vmatprep.subr.mxu0 0.0
  %301 = vmatpush1.msra.mxu0 0.0
  %302 = vmatprep.subr.mxu0 0.0
  %303 = vmatpush1.msra.mxu0 0.0
  %304 = vmatprep.mubr.f32.mxu0 0.0
  %305 = vmatmul.mubr.f32.gmra.mrb[0].mxu0 %v217
  %v306 = vpop.f32.mrb[0].mxu0
  %v307 = vadd.f32 0.0, %v306
  %v308 = vpop.f32.mrb[0].mxu0
  %v309 = vadd.f32 0.0, %v308
  %310 = vmatprep.mubr.f32.mxu0 0.0
  %311 = vmatmul.mubr.f32.gmra.mrb[0].mxu0 %v220
  %v312 = vpop.f32.mrb[0].mxu0
  %v313 = vadd.f32 0.0, %v312
  %v314 = vpop.f32.mrb[0].mxu0
  %v315 = vadd.f32 0.0, %v314
  %316 = vmatprep.mubr.f32.mxu0 0.0
  %317 = vmatmul.mubr.f32.gmra.mrb[0].mxu0 %v223
  %v318 = vpop.f32.mrb[0].mxu0
  %v319 = vadd.f32 0.0, %v318
  %v320 = vpop.f32.mrb[0].mxu0
  %v321 = vadd.f32 0.0, %v320
  %322 = vmatprep.mubr.f32.mxu0 0.0
  %323 = vmatmul.mubr.f32.gmra.mrb[0].mxu0 %v226
  %v324 = vpop.f32.mrb[0].mxu0
  %v325 = vadd.f32 0.0, %v324
  %v326 = vpop.f32.mrb[0].mxu0
  %v327 = vadd.f32 0.0, %v326
  %328 = vmatprep.mubr.f32.mxu0 0.0
  %329 = vmatmul.mubr.f32.gmra.mrb[0].mxu0 %v229
  %v330 = vpop.f32.mrb[0].mxu0
  %v331 = vadd.f32 0.0, %v330
  %v332 = vpop.f32.mrb[0].mxu0
  %v333 = vadd.f32 0.0, %v332
  %334 = vmatprep.mubr.f32.mxu0 0.0
  %335 = vmatmul.mubr.f32.gmra.mrb[0].mxu0 %v232
  %v336 = vpop.f32.mrb[0].mxu0
  %v337 = vadd.f32 0.0, %v336
  %v338 = vpop.f32.mrb[0].mxu0
  %v339 = vadd.f32 0.0, %v338
  %340 = vmatprep.mubr.f32.mxu0 0.0
  %341 = vmatmul.mubr.f32.gmra.mrb[0].mxu0 %v235
  %v342 = vpop.f32.mrb[0].mxu0
  %v343 = vadd.f32 0.0, %v342
  %v344 = vpop.f32.mrb[0].mxu0
  %v345 = vadd.f32 0.0, %v344
  %346 = vmatprep.mubr.f32.mxu0 0.0
  %347 = vmatmul.mubr.f32.gmra.mrb[0].mxu0 %v238
  %v348 = vpop.f32.mrb[0].mxu0
  %v349 = vadd.f32 0.0, %v348
  %v350 = vpop.f32.mrb[0].mxu0
  %v351 = vadd.f32 0.0, %v350
  %352 = vdwg.mxu0
  %v353 = vmax.f32 %v307, %v319
  %v354 = vmax.f32 %v313, %v325
  %v355 = vmax.f32 %v353, %v331
  %v356 = vmax.f32 %v354, %v337
  %v357 = vmax.f32 %v355, %v343
  %v358 = vmax.f32 %v356, %v349
  %v359 = vmax.f32 %v357, %v358
  %v360 = vrot.slane %v359, 4
  %v361 = vmax.f32 %v359, %v360
  %v362 = vrot.slane %v361, 2
  %v363 = vmax.f32 %v361, %v362
  %v364 = vrot.slane %v363, 1
  %v365 = vmax.f32 %v363, %v364
  %v366 = vmax.f32 %v309, %v321
  %v367 = vmax.f32 %v315, %v327
  %v368 = vmax.f32 %v366, %v333
  %v369 = vmax.f32 %v367, %v339
  %v370 = vmax.f32 %v368, %v345
  %v371 = vmax.f32 %v369, %v351
  %v372 = vmax.f32 %v370, %v371
  %v373 = vrot.slane %v372, 4
  %v374 = vmax.f32 %v372, %v373
  %v375 = vrot.slane %v374, 2
  %v376 = vmax.f32 %v374, %v375
  %v377 = vrot.slane %v376, 1
  %v378 = vmax.f32 %v376, %v377
  %v379 = vsub.f32 %v307, %v365
  %v380 = vsub.f32 %v309, %v378
  %v381 = vsub.f32 %v313, %v365
  %v382 = vsub.f32 %v315, %v378
  %v383 = vsub.f32 %v319, %v365
  %v384 = vsub.f32 %v321, %v378
  %v385 = vsub.f32 %v325, %v365
  %v386 = vsub.f32 %v327, %v378
  %v387 = vsub.f32 %v331, %v365
  %v388 = vsub.f32 %v333, %v378
  %v389 = vsub.f32 %v337, %v365
  %v390 = vsub.f32 %v339, %v378
  %v391 = vsub.f32 %v343, %v365
  %v392 = vsub.f32 %v345, %v378
  %v393 = vsub.f32 %v349, %v365
  %v394 = vsub.f32 %v351, %v378
  %v395 = vmul.f32 %v379, 1.442695
  %v396 = vpow.pop %v395
  %v397 = vmul.f32 %v380, 1.442695
  %v398 = vpow.pop %v397
  %v399 = vmul.f32 %v381, 1.442695
  %v400 = vpow.pop %v399
  %v401 = vmul.f32 %v382, 1.442695
  %v402 = vpow.pop %v401
  %v403 = vmul.f32 %v383, 1.442695
  %v404 = vpow.pop %v403
  %v405 = vmul.f32 %v384, 1.442695
  %v406 = vpow.pop %v405
  %v407 = vmul.f32 %v385, 1.442695
  %v408 = vpow.pop %v407
  %v409 = vmul.f32 %v386, 1.442695
  %v410 = vpow.pop %v409
  %v411 = vmul.f32 %v387, 1.442695
  %v412 = vpow.pop %v411
  %v413 = vmul.f32 %v388, 1.442695
  %v414 = vpow.pop %v413
  %v415 = vmul.f32 %v389, 1.442695
  %v416 = vpow.pop %v415
  %v417 = vmul.f32 %v390, 1.442695
  %v418 = vpow.pop %v417
  %v419 = vmul.f32 %v391, 1.442695
  %v420 = vpow.pop %v419
  %v421 = vmul.f32 %v392, 1.442695
  %v422 = vpow.pop %v421
  %v423 = vmul.f32 %v393, 1.442695
  %v424 = vpow.pop %v423
  %v425 = vmul.f32 %v394, 1.442695
  %v426 = vpow.pop %v425
  %v427 = vld [vmem:[%s2] sm:$0x1]
  %vm428 = vcmask 523264
  %v430 = vsel %vm428, %v427, 0
  %432 = vmatprep.subr.mxu0 %v398
  %433 = vmatpush1.msra.mxu0 %v396
  %434 = vmatprep.subr.mxu0 %v402
  %435 = vmatpush1.msra.mxu0 %v400
  %436 = vmatprep.subr.mxu0 %v406
  %437 = vmatpush1.msra.mxu0 %v404
  %438 = vmatprep.subr.mxu0 %v410
  %439 = vmatpush1.msra.mxu0 %v408
  %440 = vmatprep.subr.mxu0 %v414
  %441 = vmatpush1.msra.mxu0 %v412
  %442 = vmatprep.subr.mxu0 %v418
  %443 = vmatpush1.msra.mxu0 %v416
  %444 = vmatprep.subr.mxu0 %v422
  %445 = vmatpush1.msra.mxu0 %v420
  %446 = vmatprep.subr.mxu0 %v426
  %447 = vmatpush1.msra.mxu0 %v424
  %448 = vmatprep.subr.mxu0 0.0
  %449 = vmatpush1.msra.mxu0 0.0
  %450 = vmatprep.subr.mxu0 0.0
  %451 = vmatpush1.msra.mxu0 0.0
  %452 = vmatprep.subr.mxu0 0.0
  %453 = vmatpush1.msra.mxu0 0.0
  %454 = vmatprep.subr.mxu0 0.0
  %455 = vmatpush1.msra.mxu0 0.0
  %456 = vmatprep.subr.mxu0 0.0
  %457 = vmatpush1.msra.mxu0 0.0
  %458 = vmatprep.subr.mxu0 0.0
  %459 = vmatpush1.msra.mxu0 0.0
  %460 = vmatprep.subr.mxu0 0.0
  %461 = vmatpush1.msra.mxu0 0.0
  %462 = vmatprep.subr.mxu0 0.0
  %463 = vmatpush1.msra.mxu0 0.0
  %464 = vmatprep.subr.mxu0 0.0
  %465 = vmatpush1.msra.mxu0 0.0
  %466 = vmatprep.subr.mxu0 0.0
  %467 = vmatpush1.msra.mxu0 0.0
  %468 = vmatprep.subr.mxu0 0.0
  %469 = vmatpush1.msra.mxu0 0.0
  %470 = vmatprep.subr.mxu0 0.0
  %471 = vmatpush1.msra.mxu0 0.0
  %472 = vmatprep.subr.mxu0 0.0
  %473 = vmatpush1.msra.mxu0 0.0
  %474 = vmatprep.subr.mxu0 0.0
  %475 = vmatpush1.msra.mxu0 0.0
  %476 = vmatprep.subr.mxu0 0.0
  %477 = vmatpush1.msra.mxu0 0.0
  %478 = vmatprep.subr.mxu0 0.0
  %479 = vmatpush1.msra.mxu0 0.0
  %480 = vmatprep.subr.mxu0 0.0
  %481 = vmatpush1.msra.mxu0 0.0
  %482 = vmatprep.subr.mxu0 0.0
  %483 = vmatpush1.msra.mxu0 0.0
  %484 = vmatprep.subr.mxu0 0.0
  %485 = vmatpush1.msra.mxu0 0.0
  %486 = vmatprep.subr.mxu0 0.0
  %487 = vmatpush1.msra.mxu0 0.0
  %488 = vmatprep.subr.mxu0 0.0
  %489 = vmatpush1.msra.mxu0 0.0
  %490 = vmatprep.subr.mxu0 0.0
  %491 = vmatpush1.msra.mxu0 0.0
  %492 = vmatprep.subr.mxu0 0.0
  %493 = vmatpush1.msra.mxu0 0.0
  %494 = vmatprep.subr.mxu0 0.0
  %495 = vmatpush1.msra.mxu0 0.0
  %496 = vmatprep.mubr.f32.mxu0 0.0
  %497 = vmatmul.mubr.f32.gmra.mrb[0].mxu0 %v430
  %v498 = vpop.f32.mrb[0].mxu0
  %v499 = vadd.f32 0.0, %v498
  %v500 = vpop.f32.mrb[0].mxu0
  %v501 = vadd.f32 0.0, %v500
  %502 = vdwg.mxu0
  %v503 = vadd.f32 %v396, %v400
  %v504 = vadd.f32 %v503, %v404
  %v505 = vadd.f32 %v504, %v408
  %v506 = vadd.f32 %v505, %v412
  %v507 = vadd.f32 %v506, %v416
  %v508 = vadd.f32 %v507, %v420
  %v509 = vadd.f32 %v508, %v424
  %v510 = vrot.slane %v509, 4
  %v511 = vadd.f32 %v509, %v510
  %v512 = vrot.slane %v511, 2
  %v513 = vadd.f32 %v511, %v512
  %v514 = vrot.slane %v513, 1
  %v515 = vadd.f32 %v513, %v514
  %v516 = vadd.f32 %v398, %v402
  %v517 = vadd.f32 %v516, %v406
  %v518 = vadd.f32 %v517, %v410
  %v519 = vadd.f32 %v518, %v414
  %v520 = vadd.f32 %v519, %v418
  %v521 = vadd.f32 %v520, %v422
  %v522 = vadd.f32 %v521, %v426
  %v523 = vrot.slane %v522, 4
  %v524 = vadd.f32 %v522, %v523
  %v525 = vrot.slane %v524, 2
  %v526 = vadd.f32 %v524, %v525
  %v527 = vrot.slane %v526, 1
  %v528 = vadd.f32 %v526, %v527
  %v529 = vrcp.pop %v515
  %v530 = vrcp.pop %v528
  %v531 = vmul.f32 %v499, %v529
  %v532 = vmul.f32 %v501, %v530
  %v535 = vcombine.low %v531, %v532
  %v537 = vunpack.c.l.s4 1966171168
  %v538 = vunpack.c.0.s8 %v537
  %v539 = vlaneseq
  %v540 = vshrl.u32 %v539, 7
  %v541 = vsub.s32 %v538, %v540
  %v542 = vrot.slane %v535, %v541
  %v544 = vunpack.c.l.s4 1966171168
  %v545 = vunpack.c.0.s8 %v544
  %v546 = vlaneseq
  %v547 = vshrl.u32 %v546, 7
  %v548 = vsub.s32 %v545, %v547
  %v549 = vrot.slane %v542, %v548
  %v551 = vlaneseq
  %vm552 = vcmp.ge.s32.totalorder %v551, 0
  %vm553 = vcmp.lt.s32.totalorder %v551, 256
  %vm554 = vmand %vm552, %vm553
  %555 = vst.msk [vmem:[%s5] ss:$2 sm:$0x3] %vm554, %v549
  %s556 = scalar_lea.vmem %s0, 16
  %v557 = vld [vmem:[%s556] sm:$0x1f]
  %v558 = vld [vmem:[%s556 + $0x8] sm:$0x1f]
  %v560 = vsel %vm28, %v557, 0
  %v563 = vsel %vm28, %v558, 0
  %565 = vmatprep.subr.mxu0 %v563
  %566 = vmatpush1.msra.mxu0 %v560
  %567 = vmatprep.subr.mxu0 0.0
  %568 = vmatpush1.msra.mxu0 0.0
  %569 = vmatprep.subr.mxu0 0.0
  %570 = vmatpush1.msra.mxu0 0.0
  %571 = vmatprep.subr.mxu0 0.0
  %572 = vmatpush1.msra.mxu0 0.0
  %573 = vmatprep.subr.mxu0 0.0
  %574 = vmatpush1.msra.mxu0 0.0
  %575 = vmatprep.subr.mxu0 0.0
  %576 = vmatpush1.msra.mxu0 0.0
  %577 = vmatprep.subr.mxu0 0.0
  %578 = vmatpush1.msra.mxu0 0.0
  %579 = vmatprep.subr.mxu0 0.0
  %580 = vmatpush1.msra.mxu0 0.0
  %581 = vmatprep.subr.mxu0 0.0
  %582 = vmatpush1.msra.mxu0 0.0
  %583 = vmatprep.subr.mxu0 0.0
  %584 = vmatpush1.msra.mxu0 0.0
  %585 = vmatprep.subr.mxu0 0.0
  %586 = vmatpush1.msra.mxu0 0.0
  %587 = vmatprep.subr.mxu0 0.0
  %588 = vmatpush1.msra.mxu0 0.0
  %589 = vmatprep.subr.mxu0 0.0
  %590 = vmatpush1.msra.mxu0 0.0
  %591 = vmatprep.subr.mxu0 0.0
  %592 = vmatpush1.msra.mxu0 0.0
  %593 = vmatprep.subr.mxu0 0.0
  %594 = vmatpush1.msra.mxu0 0.0
  %595 = vmatprep.subr.mxu0 0.0
  %596 = vmatpush1.msra.mxu0 0.0
  %597 = vmatprep.subr.mxu0 0.0
  %598 = vmatpush1.msra.mxu0 0.0
  %599 = vmatprep.subr.mxu0 0.0
  %600 = vmatpush1.msra.mxu0 0.0
  %601 = vmatprep.subr.mxu0 0.0
  %602 = vmatpush1.msra.mxu0 0.0
  %603 = vmatprep.subr.mxu0 0.0
  %604 = vmatpush1.msra.mxu0 0.0
  %605 = vmatprep.subr.mxu0 0.0
  %606 = vmatpush1.msra.mxu0 0.0
  %607 = vmatprep.subr.mxu0 0.0
  %608 = vmatpush1.msra.mxu0 0.0
  %609 = vmatprep.subr.mxu0 0.0
  %610 = vmatpush1.msra.mxu0 0.0
  %611 = vmatprep.subr.mxu0 0.0
  %612 = vmatpush1.msra.mxu0 0.0
  %613 = vmatprep.subr.mxu0 0.0
  %614 = vmatpush1.msra.mxu0 0.0
  %615 = vmatprep.subr.mxu0 0.0
  %616 = vmatpush1.msra.mxu0 0.0
  %617 = vmatprep.subr.mxu0 0.0
  %618 = vmatpush1.msra.mxu0 0.0
  %619 = vmatprep.subr.mxu0 0.0
  %620 = vmatpush1.msra.mxu0 0.0
  %621 = vmatprep.subr.mxu0 0.0
  %622 = vmatpush1.msra.mxu0 0.0
  %623 = vmatprep.subr.mxu0 0.0
  %624 = vmatpush1.msra.mxu0 0.0
  %625 = vmatprep.subr.mxu0 0.0
  %626 = vmatpush1.msra.mxu0 0.0
  %627 = vmatprep.subr.mxu0 0.0
  %628 = vmatpush1.msra.mxu0 0.0
  %629 = vmatprep.mubr.f32.mxu0 0.0
  %630 = vmatmul.mubr.f32.gmra.mrb[0].mxu0 %v26
  %v631 = vpop.f32.mrb[0].mxu0
  %v632 = vadd.f32 0.0, %v631
  %v633 = vpop.f32.mrb[0].mxu0
  %v634 = vadd.f32 0.0, %v633
  %635 = vdwg.mxu0
  %s636 = scalar_lea.vmem %s1, 8
  %v637 = vld [vmem:[%s636] sm:$0x1f]
  %v639 = vsel %vm28, %v637, 0
  %641 = vmatprep.subr.mxu0 0.0
  %642 = vmatpush1.msra.mxu0 %v639
  %643 = vmatprep.subr.mxu0 0.0
  %644 = vmatpush1.msra.mxu0 0.0
  %645 = vmatprep.subr.mxu0 0.0
  %646 = vmatpush1.msra.mxu0 0.0
  %647 = vmatprep.subr.mxu0 0.0
  %648 = vmatpush1.msra.mxu0 0.0
  %649 = vmatprep.subr.mxu0 0.0
  %650 = vmatpush1.msra.mxu0 0.0
  %651 = vmatprep.subr.mxu0 0.0
  %652 = vmatpush1.msra.mxu0 0.0
  %653 = vmatprep.subr.mxu0 0.0
  %654 = vmatpush1.msra.mxu0 0.0
  %655 = vmatprep.subr.mxu0 0.0
  %656 = vmatpush1.msra.mxu0 0.0
  %657 = vmatprep.subr.mxu0 0.0
  %658 = vmatpush1.msra.mxu0 0.0
  %659 = vmatprep.subr.mxu0 0.0
  %660 = vmatpush1.msra.mxu0 0.0
  %661 = vmatprep.subr.mxu0 0.0
  %662 = vmatpush1.msra.mxu0 0.0
  %663 = vmatprep.subr.mxu0 0.0
  %664 = vmatpush1.msra.mxu0 0.0
  %665 = vmatprep.subr.mxu0 0.0
  %666 = vmatpush1.msra.mxu0 0.0
  %667 = vmatprep.subr.mxu0 0.0
  %668 = vmatpush1.msra.mxu0 0.0
  %669 = vmatprep.subr.mxu0 0.0
  %670 = vmatpush1.msra.mxu0 0.0
  %671 = vmatprep.subr.mxu0 0.0
  %672 = vmatpush1.msra.mxu0 0.0
  %673 = vmatprep.subr.mxu0 0.0
  %674 = vmatpush1.msra.mxu0 0.0
  %675 = vmatprep.subr.mxu0 0.0
  %676 = vmatpush1.msra.mxu0 0.0
  %677 = vmatprep.subr.mxu0 0.0
  %678 = vmatpush1.msra.mxu0 0.0
  %679 = vmatprep.subr.mxu0 0.0
  %680 = vmatpush1.msra.mxu0 0.0
  %681 = vmatprep.subr.mxu0 0.0
  %682 = vmatpush1.msra.mxu0 0.0
  %683 = vmatprep.subr.mxu0 0.0
  %684 = vmatpush1.msra.mxu0 0.0
  %685 = vmatprep.subr.mxu0 0.0
  %686 = vmatpush1.msra.mxu0 0.0
  %687 = vmatprep.subr.mxu0 0.0
  %688 = vmatpush1.msra.mxu0 0.0
  %689 = vmatprep.subr.mxu0 0.0
  %690 = vmatpush1.msra.mxu0 0.0
  %691 = vmatprep.subr.mxu0 0.0
  %692 = vmatpush1.msra.mxu0 0.0
  %693 = vmatprep.subr.mxu0 0.0
  %694 = vmatpush1.msra.mxu0 0.0
  %695 = vmatprep.subr.mxu0 0.0
  %696 = vmatpush1.msra.mxu0 0.0
  %697 = vmatprep.subr.mxu0 0.0
  %698 = vmatpush1.msra.mxu0 0.0
  %699 = vmatprep.subr.mxu0 0.0
  %700 = vmatpush1.msra.mxu0 0.0
  %701 = vmatprep.subr.mxu0 0.0
  %702 = vmatpush1.msra.mxu0 0.0
  %703 = vmatprep.subr.mxu0 0.0
  %704 = vmatpush1.msra.mxu0 0.0
  %705 = vmatprep.mubr.f32.mxu0 0.0
  %706 = vmatmul.mubr.f32.gmra.mrb[0].mxu0 %v108
  %v707 = vpop.f32.mrb[0].mxu0
  %v708 = vadd.f32 0.0, %v707
  %v709 = vpop.f32.mrb[0].mxu0
  %710 = vdwg.mxu0
  %711 = vxpose.xlu0.b32.start [1/16] %v708, 128
  %712 = vxpose.xlu0.b32.cont [2/16] 0.0, 128
  %713 = vxpose.xlu0.b32.cont [3/16] 0.0, 128
  %714 = vxpose.xlu0.b32.cont [4/16] 0.0, 128
  %715 = vxpose.xlu0.b32.cont [5/16] 0.0, 128
  %716 = vxpose.xlu0.b32.cont [6/16] 0.0, 128
  %717 = vxpose.xlu0.b32.cont [7/16] 0.0, 128
  %718 = vxpose.xlu0.b32.cont [8/16] 0.0, 128
  %719 = vxpose.xlu0.b32.cont [9/16] 0.0, 128
  %720 = vxpose.xlu0.b32.cont [10/16] 0.0, 128
  %721 = vxpose.xlu0.b32.cont [11/16] 0.0, 128
  %722 = vxpose.xlu0.b32.cont [12/16] 0.0, 128
  %723 = vxpose.xlu0.b32.cont [13/16] 0.0, 128
  %724 = vxpose.xlu0.b32.cont [14/16] 0.0, 128
  %725 = vxpose.xlu0.b32.cont [15/16] 0.0, 128
  %726 = vxpose.xlu0.b32.end [16/16] 0.0, 128
  %v727 = vpop.trf.xlu0
  %v728 = vpop.trf.xlu0
  %v729 = vpop.trf.xlu0
  %v730 = vpop.trf.xlu0
  %v731 = vpop.trf.xlu0
  %v732 = vpop.trf.xlu0
  %v733 = vpop.trf.xlu0
  %v734 = vpop.trf.xlu0
  %v735 = vpop.trf.xlu0
  %v736 = vpop.trf.xlu0
  %v737 = vpop.trf.xlu0
  %v738 = vpop.trf.xlu0
  %v739 = vpop.trf.xlu0
  %v740 = vpop.trf.xlu0
  %v741 = vpop.trf.xlu0
  %v742 = vpop.trf.xlu0
  %v744 = vsel %vm215, %v727, 0
  %v747 = vsel %vm215, %v728, 0
  %v750 = vsel %vm215, %v729, 0
  %v753 = vsel %vm215, %v730, 0
  %v756 = vsel %vm215, %v731, 0
  %v759 = vsel %vm215, %v732, 0
  %v762 = vsel %vm215, %v733, 0
  %v765 = vsel %vm215, %v734, 0
  %767 = vmatprep.subr.mxu0 %v634
  %768 = vmatpush1.msra.mxu0 %v632
  %769 = vmatprep.subr.mxu0 0.0
  %770 = vmatpush1.msra.mxu0 0.0
  %771 = vmatprep.subr.mxu0 0.0
  %772 = vmatpush1.msra.mxu0 0.0
  %773 = vmatprep.subr.mxu0 0.0
  %774 = vmatpush1.msra.mxu0 0.0
  %775 = vmatprep.subr.mxu0 0.0
  %776 = vmatpush1.msra.mxu0 0.0
  %777 = vmatprep.subr.mxu0 0.0
  %778 = vmatpush1.msra.mxu0 0.0
  %779 = vmatprep.subr.mxu0 0.0
  %780 = vmatpush1.msra.mxu0 0.0
  %781 = vmatprep.subr.mxu0 0.0
  %782 = vmatpush1.msra.mxu0 0.0
  %783 = vmatprep.subr.mxu0 0.0
  %784 = vmatpush1.msra.mxu0 0.0
  %785 = vmatprep.subr.mxu0 0.0
  %786 = vmatpush1.msra.mxu0 0.0
  %787 = vmatprep.subr.mxu0 0.0
  %788 = vmatpush1.msra.mxu0 0.0
  %789 = vmatprep.subr.mxu0 0.0
  %790 = vmatpush1.msra.mxu0 0.0
  %791 = vmatprep.subr.mxu0 0.0
  %792 = vmatpush1.msra.mxu0 0.0
  %793 = vmatprep.subr.mxu0 0.0
  %794 = vmatpush1.msra.mxu0 0.0
  %795 = vmatprep.subr.mxu0 0.0
  %796 = vmatpush1.msra.mxu0 0.0
  %797 = vmatprep.subr.mxu0 0.0
  %798 = vmatpush1.msra.mxu0 0.0
  %799 = vmatprep.subr.mxu0 0.0
  %800 = vmatpush1.msra.mxu0 0.0
  %801 = vmatprep.subr.mxu0 0.0
  %802 = vmatpush1.msra.mxu0 0.0
  %803 = vmatprep.subr.mxu0 0.0
  %804 = vmatpush1.msra.mxu0 0.0
  %805 = vmatprep.subr.mxu0 0.0
  %806 = vmatpush1.msra.mxu0 0.0
  %807 = vmatprep.subr.mxu0 0.0
  %808 = vmatpush1.msra.mxu0 0.0
  %809 = vmatprep.subr.mxu0 0.0
  %810 = vmatpush1.msra.mxu0 0.0
  %811 = vmatprep.subr.mxu0 0.0
  %812 = vmatpush1.msra.mxu0 0.0
  %813 = vmatprep.subr.mxu0 0.0
  %814 = vmatpush1.msra.mxu0 0.0
  %815 = vmatprep.subr.mxu0 0.0
  %816 = vmatpush1.msra.mxu0 0.0
  %817 = vmatprep.subr.mxu0 0.0
  %818 = vmatpush1.msra.mxu0 0.0
  %819 = vmatprep.subr.mxu0 0.0
  %820 = vmatpush1.msra.mxu0 0.0
  %821 = vmatprep.subr.mxu0 0.0
  %822 = vmatpush1.msra.mxu0 0.0
  %823 = vmatprep.subr.mxu0 0.0
  %824 = vmatpush1.msra.mxu0 0.0
  %825 = vmatprep.subr.mxu0 0.0
  %826 = vmatpush1.msra.mxu0 0.0
  %827 = vmatprep.subr.mxu0 0.0
  %828 = vmatpush1.msra.mxu0 0.0
  %829 = vmatprep.subr.mxu0 0.0
  %830 = vmatpush1.msra.mxu0 0.0
  %831 = vmatprep.mubr.f32.mxu0 0.0
  %832 = vmatmul.mubr.f32.gmra.mrb[0].mxu0 %v744
  %v833 = vpop.f32.mrb[0].mxu0
  %v834 = vadd.f32 0.0, %v833
  %v835 = vpop.f32.mrb[0].mxu0
  %v836 = vadd.f32 0.0, %v835
  %837 = vmatprep.mubr.f32.mxu0 0.0
  %838 = vmatmul.mubr.f32.gmra.mrb[0].mxu0 %v747
  %v839 = vpop.f32.mrb[0].mxu0
  %v840 = vadd.f32 0.0, %v839
  %v841 = vpop.f32.mrb[0].mxu0
  %v842 = vadd.f32 0.0, %v841
  %843 = vmatprep.mubr.f32.mxu0 0.0
  %844 = vmatmul.mubr.f32.gmra.mrb[0].mxu0 %v750
  %v845 = vpop.f32.mrb[0].mxu0
  %v846 = vadd.f32 0.0, %v845
  %v847 = vpop.f32.mrb[0].mxu0
  %v848 = vadd.f32 0.0, %v847
  %849 = vmatprep.mubr.f32.mxu0 0.0
  %850 = vmatmul.mubr.f32.gmra.mrb[0].mxu0 %v753
  %v851 = vpop.f32.mrb[0].mxu0
  %v852 = vadd.f32 0.0, %v851
  %v853 = vpop.f32.mrb[0].mxu0
  %v854 = vadd.f32 0.0, %v853
  %855 = vmatprep.mubr.f32.mxu0 0.0
  %856 = vmatmul.mubr.f32.gmra.mrb[0].mxu0 %v756
  %v857 = vpop.f32.mrb[0].mxu0
  %v858 = vadd.f32 0.0, %v857
  %v859 = vpop.f32.mrb[0].mxu0
  %v860 = vadd.f32 0.0, %v859
  %861 = vmatprep.mubr.f32.mxu0 0.0
  %862 = vmatmul.mubr.f32.gmra.mrb[0].mxu0 %v759
  %v863 = vpop.f32.mrb[0].mxu0
  %v864 = vadd.f32 0.0, %v863
  %v865 = vpop.f32.mrb[0].mxu0
  %v866 = vadd.f32 0.0, %v865
  %867 = vmatprep.mubr.f32.mxu0 0.0
  %868 = vmatmul.mubr.f32.gmra.mrb[0].mxu0 %v762
  %v869 = vpop.f32.mrb[0].mxu0
  %v870 = vadd.f32 0.0, %v869
  %v871 = vpop.f32.mrb[0].mxu0
  %v872 = vadd.f32 0.0, %v871
  %873 = vmatprep.mubr.f32.mxu0 0.0
  %874 = vmatmul.mubr.f32.gmra.mrb[0].mxu0 %v765
  %v875 = vpop.f32.mrb[0].mxu0
  %v876 = vadd.f32 0.0, %v875
  %v877 = vpop.f32.mrb[0].mxu0
  %v878 = vadd.f32 0.0, %v877
  %879 = vdwg.mxu0
  %v880 = vmax.f32 %v834, %v846
  %v881 = vmax.f32 %v840, %v852
  %v882 = vmax.f32 %v880, %v858
  %v883 = vmax.f32 %v881, %v864
  %v884 = vmax.f32 %v882, %v870
  %v885 = vmax.f32 %v883, %v876
  %v886 = vmax.f32 %v884, %v885
  %v887 = vrot.slane %v886, 4
  %v888 = vmax.f32 %v886, %v887
  %v889 = vrot.slane %v888, 2
  %v890 = vmax.f32 %v888, %v889
  %v891 = vrot.slane %v890, 1
  %v892 = vmax.f32 %v890, %v891
  %v893 = vmax.f32 %v836, %v848
  %v894 = vmax.f32 %v842, %v854
  %v895 = vmax.f32 %v893, %v860
  %v896 = vmax.f32 %v894, %v866
  %v897 = vmax.f32 %v895, %v872
  %v898 = vmax.f32 %v896, %v878
  %v899 = vmax.f32 %v897, %v898
  %v900 = vrot.slane %v899, 4
  %v901 = vmax.f32 %v899, %v900
  %v902 = vrot.slane %v901, 2
  %v903 = vmax.f32 %v901, %v902
  %v904 = vrot.slane %v903, 1
  %v905 = vmax.f32 %v903, %v904
  %v906 = vsub.f32 %v834, %v892
  %v907 = vsub.f32 %v836, %v905
  %v908 = vsub.f32 %v840, %v892
  %v909 = vsub.f32 %v842, %v905
  %v910 = vsub.f32 %v846, %v892
  %v911 = vsub.f32 %v848, %v905
  %v912 = vsub.f32 %v852, %v892
  %v913 = vsub.f32 %v854, %v905
  %v914 = vsub.f32 %v858, %v892
  %v915 = vsub.f32 %v860, %v905
  %v916 = vsub.f32 %v864, %v892
  %v917 = vsub.f32 %v866, %v905
  %v918 = vsub.f32 %v870, %v892
  %v919 = vsub.f32 %v872, %v905
  %v920 = vsub.f32 %v876, %v892
  %v921 = vsub.f32 %v878, %v905
  %v922 = vmul.f32 %v906, 1.442695
  %v923 = vpow.pop %v922
  %v924 = vmul.f32 %v907, 1.442695
  %v925 = vpow.pop %v924
  %v926 = vmul.f32 %v908, 1.442695
  %v927 = vpow.pop %v926
  %v928 = vmul.f32 %v909, 1.442695
  %v929 = vpow.pop %v928
  %v930 = vmul.f32 %v910, 1.442695
  %v931 = vpow.pop %v930
  %v932 = vmul.f32 %v911, 1.442695
  %v933 = vpow.pop %v932
  %v934 = vmul.f32 %v912, 1.442695
  %v935 = vpow.pop %v934
  %v936 = vmul.f32 %v913, 1.442695
  %v937 = vpow.pop %v936
  %v938 = vmul.f32 %v914, 1.442695
  %v939 = vpow.pop %v938
  %v940 = vmul.f32 %v915, 1.442695
  %v941 = vpow.pop %v940
  %v942 = vmul.f32 %v916, 1.442695
  %v943 = vpow.pop %v942
  %v944 = vmul.f32 %v917, 1.442695
  %v945 = vpow.pop %v944
  %v946 = vmul.f32 %v918, 1.442695
  %v947 = vpow.pop %v946
  %v948 = vmul.f32 %v919, 1.442695
  %v949 = vpow.pop %v948
  %v950 = vmul.f32 %v920, 1.442695
  %v951 = vpow.pop %v950
  %v952 = vmul.f32 %v921, 1.442695
  %v953 = vpow.pop %v952
  %s954 = scalar_lea.vmem %s2, 1
  %v955 = vld [vmem:[%s954] sm:$0x1]
  %v957 = vsel %vm428, %v955, 0
  %959 = vmatprep.subr.mxu0 %v925
  %960 = vmatpush1.msra.mxu0 %v923
  %961 = vmatprep.subr.mxu0 %v929
  %962 = vmatpush1.msra.mxu0 %v927
  %963 = vmatprep.subr.mxu0 %v933
  %964 = vmatpush1.msra.mxu0 %v931
  %965 = vmatprep.subr.mxu0 %v937
  %966 = vmatpush1.msra.mxu0 %v935
  %967 = vmatprep.subr.mxu0 %v941
  %968 = vmatpush1.msra.mxu0 %v939
  %969 = vmatprep.subr.mxu0 %v945
  %970 = vmatpush1.msra.mxu0 %v943
  %971 = vmatprep.subr.mxu0 %v949
  %972 = vmatpush1.msra.mxu0 %v947
  %973 = vmatprep.subr.mxu0 %v953
  %974 = vmatpush1.msra.mxu0 %v951
  %975 = vmatprep.subr.mxu0 0.0
  %976 = vmatpush1.msra.mxu0 0.0
  %977 = vmatprep.subr.mxu0 0.0
  %978 = vmatpush1.msra.mxu0 0.0
  %979 = vmatprep.subr.mxu0 0.0
  %980 = vmatpush1.msra.mxu0 0.0
  %981 = vmatprep.subr.mxu0 0.0
  %982 = vmatpush1.msra.mxu0 0.0
  %983 = vmatprep.subr.mxu0 0.0
  %984 = vmatpush1.msra.mxu0 0.0
  %985 = vmatprep.subr.mxu0 0.0
  %986 = vmatpush1.msra.mxu0 0.0
  %987 = vmatprep.subr.mxu0 0.0
  %988 = vmatpush1.msra.mxu0 0.0
  %989 = vmatprep.subr.mxu0 0.0
  %990 = vmatpush1.msra.mxu0 0.0
  %991 = vmatprep.subr.mxu0 0.0
  %992 = vmatpush1.msra.mxu0 0.0
  %993 = vmatprep.subr.mxu0 0.0
  %994 = vmatpush1.msra.mxu0 0.0
  %995 = vmatprep.subr.mxu0 0.0
  %996 = vmatpush1.msra.mxu0 0.0
  %997 = vmatprep.subr.mxu0 0.0
  %998 = vmatpush1.msra.mxu0 0.0
  %999 = vmatprep.subr.mxu0 0.0
  %1000 = vmatpush1.msra.mxu0 0.0
  %1001 = vmatprep.subr.mxu0 0.0
  %1002 = vmatpush1.msra.mxu0 0.0
  %1003 = vmatprep.subr.mxu0 0.0
  %1004 = vmatpush1.msra.mxu0 0.0
  %1005 = vmatprep.subr.mxu0 0.0
  %1006 = vmatpush1.msra.mxu0 0.0
  %1007 = vmatprep.subr.mxu0 0.0
  %1008 = vmatpush1.msra.mxu0 0.0
  %1009 = vmatprep.subr.mxu0 0.0
  %1010 = vmatpush1.msra.mxu0 0.0
  %1011 = vmatprep.subr.mxu0 0.0
  %1012 = vmatpush1.msra.mxu0 0.0
  %1013 = vmatprep.subr.mxu0 0.0
  %1014 = vmatpush1.msra.mxu0 0.0
  %1015 = vmatprep.subr.mxu0 0.0
  %1016 = vmatpush1.msra.mxu0 0.0
  %1017 = vmatprep.subr.mxu0 0.0
  %1018 = vmatpush1.msra.mxu0 0.0
  %1019 = vmatprep.subr.mxu0 0.0
  %1020 = vmatpush1.msra.mxu0 0.0
  %1021 = vmatprep.subr.mxu0 0.0
  %1022 = vmatpush1.msra.mxu0 0.0
  %1023 = vmatprep.mubr.f32.mxu0 0.0
  %1024 = vmatmul.mubr.f32.gmra.mrb[0].mxu0 %v957
  %v1025 = vpop.f32.mrb[0].mxu0
  %v1026 = vadd.f32 0.0, %v1025
  %v1027 = vpop.f32.mrb[0].mxu0
  %v1028 = vadd.f32 0.0, %v1027
  %1029 = vdwg.mxu0
  %v1030 = vadd.f32 %v923, %v927
  %v1031 = vadd.f32 %v1030, %v931
  %v1032 = vadd.f32 %v1031, %v935
  %v1033 = vadd.f32 %v1032, %v939
  %v1034 = vadd.f32 %v1033, %v943
  %v1035 = vadd.f32 %v1034, %v947
  %v1036 = vadd.f32 %v1035, %v951
  %v1037 = vrot.slane %v1036, 4
  %v1038 = vadd.f32 %v1036, %v1037
  %v1039 = vrot.slane %v1038, 2
  %v1040 = vadd.f32 %v1038, %v1039
  %v1041 = vrot.slane %v1040, 1
  %v1042 = vadd.f32 %v1040, %v1041
  %v1043 = vadd.f32 %v925, %v929
  %v1044 = vadd.f32 %v1043, %v933
  %v1045 = vadd.f32 %v1044, %v937
  %v1046 = vadd.f32 %v1045, %v941
  %v1047 = vadd.f32 %v1046, %v945
  %v1048 = vadd.f32 %v1047, %v949
  %v1049 = vadd.f32 %v1048, %v953
  %v1050 = vrot.slane %v1049, 4
  %v1051 = vadd.f32 %v1049, %v1050
  %v1052 = vrot.slane %v1051, 2
  %v1053 = vadd.f32 %v1051, %v1052
  %v1054 = vrot.slane %v1053, 1
  %v1055 = vadd.f32 %v1053, %v1054
  %v1056 = vrcp.pop %v1042
  %v1057 = vrcp.pop %v1055
  %v1058 = vmul.f32 %v1026, %v1056
  %v1059 = vmul.f32 %v1028, %v1057
  %v1062 = vcombine.low %v1058, %v1059
  %v1064 = vunpack.c.l.s4 1966171168
  %v1065 = vunpack.c.0.s8 %v1064
  %v1066 = vlaneseq
  %v1067 = vshrl.u32 %v1066, 7
  %v1068 = vsub.s32 %v1065, %v1067
  %v1069 = vrot.slane %v1062, %v1068
  %v1071 = vunpack.c.l.s4 1966171168
  %v1072 = vunpack.c.0.s8 %v1071
  %v1073 = vlaneseq
  %v1074 = vshrl.u32 %v1073, 7
  %v1075 = vsub.s32 %v1072, %v1074
  %v1076 = vrot.slane %v1069, %v1075
  %s1078 = scalar_lea.vmem %s5, 1
  %1079 = vst.msk [vmem:[%s1078] ss:$2 sm:$0x3] %vm554, %v1076
  // Predicated region
  $region22: #{arn_forward.1} parent=0 // pred_check
    _
  $region23: #{arn_forward.1} parent=0 // pred_check_branch
    %1081 = sbr.rel (0) target = $region25
  $region24: #{arn_forward.1} parent=0 // pred_region
    _
  $region25: #{arn_forward.1} parent=0 // pred_fallthru
    _
  // Predicated region
  $region26: #{arn_forward.1} parent=0 // pred_check
    _
  $region27: #{arn_forward.1} parent=0 // pred_check_branch
    %1083 = sbr.rel (0) target = $region29
  $region28: #{arn_forward.1} parent=0 // pred_region
    _
  $region29: #{arn_forward.1} parent=0 // pred_fallthru
    _

</llo_original>
